<compile_context>
chip_gen: v7x
topology: tpu7x:2x2x1
jax: 0.10.0
libtpu: 0.0.40
codegen_flags: <defaults>
</compile_context>

<pallas_src>
import functools
import math

import jax
import jax.numpy as jnp
from jax.experimental import pallas as pl
from jax.experimental.pallas import tpu as pltpu

ACT_DTYPE = jnp.bfloat16     # inter-kernel activations
PARAM_DTYPE = jnp.bfloat16   # matmul weights


# ----------------------------- tiling helpers -----------------------------

def _pick_tile(dim, cap, align):
    """Largest multiple of `align` <= cap that evenly divides `dim`; else full dim."""
    if dim <= cap:
        return dim
    t = (cap // align) * align
    while t >= align:
        if dim % t == 0:
            return t
        t -= align
    return dim


# ----------------------------- linear (matmul + bias [+ GELU]) -----------------------------

def _linear_kernel(x_ref, w_ref, b_ref, o_ref, acc_ref, *, activation):
    @pl.when(pl.program_id(2) == 0)
    def _init():
        acc_ref[...] = jnp.zeros_like(acc_ref)

    acc_ref[...] += jnp.dot(x_ref[...], w_ref[...],
                            preferred_element_type=jnp.float32)

    @pl.when(pl.program_id(2) == pl.num_programs(2) - 1)
    def _finalize():
        y = acc_ref[...] + b_ref[...].astype(jnp.float32)
        if activation == "gelu":
            # TODO(synk): HF RoBERTa uses exact (erf) GELU; tanh approximation used here.
            y = jax.nn.gelu(y, approximate=True)
        o_ref[...] = y.astype(o_ref.dtype)


def linear(x, w, b, activation=None):
    """x:(M,K) @ w:(K,N) + b:(N,) -> (M,N). Tiled/pipelined, f32 accumulation on MXU."""
    M, K = x.shape
    N = w.shape[1]
    tm = _pick_tile(M, 256, 8)
    tk = _pick_tile(K, 512, 128)
    tn = _pick_tile(N, 512, 128)
    kernel = functools.partial(_linear_kernel, activation=activation)
    return pl.pallas_call(
        kernel,
        out_shape=jax.ShapeDtypeStruct((M, N), x.dtype),
        grid=(M // tm, N // tn, K // tk),
        in_specs=[
            pl.BlockSpec((tm, tk), lambda i, j, k: (i, k)),
            pl.BlockSpec((tk, tn), lambda i, j, k: (k, j)),
            pl.BlockSpec((1, tn), lambda i, j, k: (0, j)),
        ],
        out_specs=pl.BlockSpec((tm, tn), lambda i, j, k: (i, j)),
        scratch_shapes=[pltpu.VMEM((tm, tn), jnp.float32)],
        compiler_params=pltpu.CompilerParams(
            dimension_semantics=("parallel", "parallel", "arbitrary"),
            vmem_limit_bytes=32 * 1024 * 1024),
    )(x, w, b.reshape(1, N))


# ----------------------------- layernorm (optionally fused residual add) -----------------------------

def _ln_finish(x, g_ref, b_ref, o_ref, eps):
    mu = jnp.mean(x, axis=-1, keepdims=True)
    xc = x - mu
    var = jnp.mean(xc * xc, axis=-1, keepdims=True)
    y = xc * jax.lax.rsqrt(var + eps) * g_ref[...].astype(jnp.float32) \
        + b_ref[...].astype(jnp.float32)
    o_ref[...] = y.astype(o_ref.dtype)


def _layernorm_kernel(x_ref, g_ref, b_ref, o_ref, *, eps):
    _ln_finish(x_ref[...].astype(jnp.float32), g_ref, b_ref, o_ref, eps)


def _add_layernorm_kernel(x_ref, r_ref, g_ref, b_ref, o_ref, *, eps):
    x = x_ref[...].astype(jnp.float32) + r_ref[...].astype(jnp.float32)
    _ln_finish(x, g_ref, b_ref, o_ref, eps)


def layernorm(x, gamma, beta, eps=1e-5, residual=None):
    """LayerNorm(x [+ residual]) over the last dim. x:(M,H). Gridded over row tiles."""
    M, H = x.shape
    tm = _pick_tile(M, 256, 8)
    row_spec = pl.BlockSpec((tm, H), lambda i: (i, 0))
    vec_spec = pl.BlockSpec((1, H), lambda i: (0, 0))
    if residual is None:
        kernel = functools.partial(_layernorm_kernel, eps=eps)
        in_specs = [row_spec, vec_spec, vec_spec]
        args = (x, gamma.reshape(1, H), beta.reshape(1, H))
    else:
        kernel = functools.partial(_add_layernorm_kernel, eps=eps)
        in_specs = [row_spec, row_spec, vec_spec, vec_spec]
        args = (x, residual, gamma.reshape(1, H), beta.reshape(1, H))
    return pl.pallas_call(
        kernel,
        out_shape=jax.ShapeDtypeStruct((M, H), x.dtype),
        grid=(M // tm,),
        in_specs=in_specs,
        out_specs=row_spec,
        compiler_params=pltpu.CompilerParams(
            dimension_semantics=("parallel",)),
    )(*args)


# ----------------------------- attention (all heads per grid step) -----------------------------

def _attn_kernel(q_ref, k_ref, v_ref, bias_ref, o_ref, *, scale):
    # Blocks for one batch element: q/k/v (NH, S, Dh); bias (1, S).
    q = q_ref[...] * scale                       # fold 1/sqrt(Dh) into q (O(S*Dh), not O(S*S))
    k = k_ref[...]
    v = v_ref[...]
    s = jnp.einsum('hqd,hkd->hqk', q, k, preferred_element_type=jnp.float32)
    s = s + bias_ref[...][:, None, :]            # (1,1,S) additive key mask
    m = jnp.max(s, axis=-1, keepdims=True)
    p = jnp.exp(s - m)
    p = p * pl.reciprocal(jnp.sum(p, axis=-1, keepdims=True), approx=True)
    ctx = jnp.einsum('hqk,hkd->hqd', p.astype(v.dtype), v,
                     preferred_element_type=jnp.float32)
    o_ref[...] = ctx.astype(o_ref.dtype)


def attention(q, k, v, bias):
    """q,k,v: (B,NH,S,Dh); bias: (B,1,S) additive mask. -> (B,NH,S,Dh)."""
    B, NH, S, Dh = q.shape
    scale = 1.0 / math.sqrt(Dh)
    kernel = functools.partial(_attn_kernel, scale=scale)
    qkv_spec = pl.BlockSpec((None, NH, S, Dh), lambda b: (b, 0, 0, 0))
    # TODO(synk): for long sequences use a flash-style online softmax over key blocks
    # instead of materializing the full (NH,S,S) score tile per batch element.
    return pl.pallas_call(
        kernel,
        out_shape=jax.ShapeDtypeStruct((B, NH, S, Dh), q.dtype),
        grid=(B,),
        in_specs=[qkv_spec, qkv_spec, qkv_spec,
                  pl.BlockSpec((None, 1, S), lambda b: (b, 0, 0))],
        out_specs=qkv_spec,
        compiler_params=pltpu.CompilerParams(
            dimension_semantics=("parallel",)),
    )(q, k, v, bias)


# ----------------------------- masked mean pool + L2 normalize -----------------------------

def _pool_norm_kernel(h_ref, m_ref, o_ref):
    h = h_ref[...].astype(jnp.float32)           # (bt, S, H)
    m = m_ref[...].astype(jnp.float32)           # (bt, S, 1)
    summed = jnp.sum(h * m, axis=1)              # (bt, H)
    cnt = jnp.maximum(jnp.sum(m, axis=1), 1.0)   # guard all-padding rows (avoid NaN)
    pooled = summed / cnt
    norm = jnp.sqrt(jnp.sum(pooled * pooled, axis=-1, keepdims=True))
    o_ref[...] = (pooled / jnp.maximum(norm, 1e-12)).astype(o_ref.dtype)


def masked_mean_pool_normalize(hidden, maskf):
    """hidden: (B,S,H); maskf: (B,S,1). -> (B,H) f32, L2-normalized. Gridded over batch."""
    B, S, H = hidden.shape
    bt = _pick_tile(B, 8, 8)
    return pl.pallas_call(
        _pool_norm_kernel,
        out_shape=jax.ShapeDtypeStruct((B, H), jnp.float32),
        grid=(B // bt,),
        in_specs=[
            pl.BlockSpec((bt, S, H), lambda b: (b, 0, 0)),
            pl.BlockSpec((bt, S, 1), lambda b: (b, 0, 0)),
        ],
        out_specs=pl.BlockSpec((bt, H), lambda b: (b, 0)),
        compiler_params=pltpu.CompilerParams(
            dimension_semantics=("parallel",)),
    )(hidden, maskf)


# ----------------------------- Encoder (RoBERTa-like) -----------------------------

CFG = dict(
    vocab_size=64,
    hidden=32,
    num_layers=2,
    num_heads=2,
    intermediate=64,
    max_pos=64,
    pad_id=1,           # RoBERTa padding token id
    ln_eps=1e-5,
)


def init_params(key, cfg):
    H, I = cfg["hidden"], cfg["intermediate"]
    std = 0.02
    ks = iter(jax.random.split(key, 4 + cfg["num_layers"] * 8))

    def nrm(shape, dtype=PARAM_DTYPE):
        return (std * jax.random.normal(next(ks), shape)).astype(dtype)

    params = {
        "tok_emb": nrm((cfg["vocab_size"], H), jnp.float32),
        "pos_emb": nrm((cfg["max_pos"], H), jnp.float32),
        "emb_ln_g": jnp.ones((H,), jnp.float32),
        "emb_ln_b": jnp.zeros((H,), jnp.float32),
        "layers": [],
    }
    for _ in range(cfg["num_layers"]):
        layer = {
            # fused QKV projection: columns [0:H]=Q, [H:2H]=K, [2H:3H]=V
            "wqkv": nrm((H, 3 * H)), "bqkv": jnp.zeros((3 * H,), jnp.float32),
            "wo": nrm((H, H)), "bo": jnp.zeros((H,), jnp.float32),
            "attn_ln_g": jnp.ones((H,), jnp.float32),
            "attn_ln_b": jnp.zeros((H,), jnp.float32),
            "w1": nrm((H, I)), "b1": jnp.zeros((I,), jnp.float32),
            "w2": nrm((I, H)), "b2": jnp.zeros((H,), jnp.float32),
            "ffn_ln_g": jnp.ones((H,), jnp.float32),
            "ffn_ln_b": jnp.zeros((H,), jnp.float32),
        }
        params["layers"].append(layer)
    return params


def encoder_forward(params, ids, cfg):
    """ids: (B, S) int32 -> last_hidden_state (B, S, H) in ACT_DTYPE."""
    B, S = ids.shape
    H = cfg["hidden"]
    NH = cfg["num_heads"]
    Dh = H // NH
    eps = cfg["ln_eps"]

    mask = (ids != cfg["pad_id"])                                   # (B, S) bool
    mask_i = mask.astype(jnp.int32)

    # RoBERTa-style position ids (padding_idx = pad_id), clamped to table size.
    pos_ids = jnp.cumsum(mask_i, axis=1) * mask_i + cfg["pad_id"]   # (B, S)
    pos_ids = jnp.minimum(pos_ids, cfg["max_pos"] - 1)

    # Embedding gathers: glue in plain JAX.
    x = jnp.take(params["tok_emb"], ids, axis=0) + \
        jnp.take(params["pos_emb"], pos_ids, axis=0)                # (B, S, H) f32
    x2 = x.astype(ACT_DTYPE).reshape(B * S, H)
    x2 = layernorm(x2, params["emb_ln_g"], params["emb_ln_b"], eps)

    # Additive attention bias over keys: 0 where valid, -1e9 where padded.
    attn_bias = ((1.0 - mask.astype(jnp.float32)) * -1e9).reshape(B, 1, S)

    for layer in params["layers"]:
        # --- self attention: fused QKV projection (one (M,H)x(H,3H) matmul) ---
        qkv = linear(x2, layer["wqkv"], layer["bqkv"])              # (B*S, 3H)
        qkv = qkv.reshape(B, S, 3, NH, Dh)
        # TODO(synk): fold the head split/merge transposes into the attention kernel
        # (pl.ds over the H axis) to remove these XLA copies at real model sizes.
        q = qkv[:, :, 0].transpose(0, 2, 1, 3)                      # (B, NH, S, Dh)
        k = qkv[:, :, 1].transpose(0, 2, 1, 3)
        v = qkv[:, :, 2].transpose(0, 2, 1, 3)
        ctx = attention(q, k, v, attn_bias)                         # (B, NH, S, Dh)
        ctx = ctx.transpose(0, 2, 1, 3).reshape(B * S, H)
        attn_out = linear(ctx, layer["wo"], layer["bo"])
        x2 = layernorm(attn_out, layer["attn_ln_g"], layer["attn_ln_b"], eps,
                       residual=x2)                                 # fused residual + LN

        # --- feed forward ---
        hdn = linear(x2, layer["w1"], layer["b1"], activation="gelu")
        ffn_out = linear(hdn, layer["w2"], layer["b2"])
        x2 = layernorm(ffn_out, layer["ffn_ln_g"], layer["ffn_ln_b"], eps,
                       residual=x2)                                 # fused residual + LN

    return x2.reshape(B, S, H)


def model_forward(params, cfg, code_inputs=None, nl_inputs=None):
    """Mirror of Model.forward: masked mean pooling + L2 normalize."""
    ids = code_inputs if code_inputs is not None else nl_inputs
    hidden = encoder_forward(params, ids, cfg)                      # (B, S, H)
    maskf = (ids != cfg["pad_id"]).astype(jnp.float32)[:, :, None]  # (B, S, 1)
    return masked_mean_pool_normalize(hidden, maskf)                # (B, H) f32


# ----------------------------- main -----------------------------

if __name__ == "__main__":
    key = jax.random.PRNGKey(0)
    pkey, ikey = jax.random.split(key)

    params = init_params(pkey, CFG)

    B, S = 2, 8
    ids = jax.random.randint(ikey, (B, S), 2, CFG["vocab_size"], dtype=jnp.int32)
    # Introduce padding (token id 1) so the mask / pooling path is exercised.
    ids = ids.at[1, 5:].set(CFG["pad_id"])

    emb = model_forward(params, CFG, code_inputs=ids)
    emb = jax.block_until_ready(emb)

    assert emb.shape == (B, CFG["hidden"])
    # Sanity: rows should be unit-norm (normalization is done in f32 in-kernel).
    norms = jnp.linalg.norm(emb, axis=1)
    assert bool(jnp.all(jnp.isfinite(emb)))
    assert bool(jnp.all(jnp.abs(norms - 1.0) < 1e-4))

    print("KERNEL_OK")
</pallas_src>

<mosaic_0001>
module attributes {stable_mosaic.version = 11 : i64} {
  func.func @_layernorm_kernel(%arg0: i32, %arg1: memref<16x32xbf16, #tpu.memory_space<vmem>>, %arg2: memref<1x32xf32, #tpu.memory_space<vmem>>, %arg3: memref<1x32xf32, #tpu.memory_space<vmem>>, %arg4: memref<16x32xbf16, #tpu.memory_space<vmem>>) attributes {dimension_semantics = [#tpu.dimension_semantics<parallel>], iteration_bounds = array<i64: 1>, scalar_prefetch = 0 : i64, scratch_operands = 0 : i64, tpu.core_type = #tpu.core_type<tc>, window_params = [{transform_indices = @transform_0, window_bounds = array<i64: 16, 32>}, {pipeline_mode = #tpu.pipeline_mode<synchronous>, transform_indices = @transform_1, window_bounds = array<i64: 1, 32>}, {pipeline_mode = #tpu.pipeline_mode<synchronous>, transform_indices = @transform_2, window_bounds = array<i64: 1, 32>}, {transform_indices = @transform_3, window_bounds = array<i64: 16, 32>}]} {
    %c0 = arith.constant 0 : index
    %c0_0 = arith.constant 0 : index
    %0 = vector.load %arg1[%c0, %c0_0] : memref<16x32xbf16, #tpu.memory_space<vmem>>, vector<16x32xbf16>
    %1 = arith.extf %0 : vector<16x32xbf16> to vector<16x32xf32>
    %cst = arith.constant dense<0.000000e+00> : vector<16xf32>
    %2 = vector.multi_reduction <add>, %1, %cst [1] : vector<16x32xf32> to vector<16xf32>
    %3 = vector.shape_cast %2 : vector<16xf32> to vector<16x1xf32>
    %cst_1 = arith.constant 3.200000e+01 : f32
    %4 = vector.broadcast %cst_1 : f32 to vector<16x1xf32>
    %5 = arith.divf %3, %4 : vector<16x1xf32>
    %6 = vector.broadcast %5 : vector<16x1xf32> to vector<16x32xf32>
    %7 = arith.subf %1, %6 : vector<16x32xf32>
    %8 = arith.mulf %7, %7 : vector<16x32xf32>
    %cst_2 = arith.constant dense<0.000000e+00> : vector<16xf32>
    %9 = vector.multi_reduction <add>, %8, %cst_2 [1] : vector<16x32xf32> to vector<16xf32>
    %10 = vector.shape_cast %9 : vector<16xf32> to vector<16x1xf32>
    %cst_3 = arith.constant 3.200000e+01 : f32
    %11 = vector.broadcast %cst_3 : f32 to vector<16x1xf32>
    %12 = arith.divf %10, %11 : vector<16x1xf32>
    %cst_4 = arith.constant 9.99999974E-6 : f32
    %13 = vector.broadcast %cst_4 : f32 to vector<16x1xf32>
    %14 = arith.addf %12, %13 : vector<16x1xf32>
    %15 = math.rsqrt %14 : vector<16x1xf32>
    %16 = vector.broadcast %15 : vector<16x1xf32> to vector<16x32xf32>
    %17 = arith.mulf %7, %16 : vector<16x32xf32>
    %c0_5 = arith.constant 0 : index
    %c0_6 = arith.constant 0 : index
    %18 = vector.load %arg2[%c0_5, %c0_6] : memref<1x32xf32, #tpu.memory_space<vmem>>, vector<1x32xf32>
    %19 = vector.broadcast %18 : vector<1x32xf32> to vector<16x32xf32>
    %20 = arith.mulf %17, %19 : vector<16x32xf32>
    %c0_7 = arith.constant 0 : index
    %c0_8 = arith.constant 0 : index
    %21 = vector.load %arg3[%c0_7, %c0_8] : memref<1x32xf32, #tpu.memory_space<vmem>>, vector<1x32xf32>
    %22 = vector.broadcast %21 : vector<1x32xf32> to vector<16x32xf32>
    %23 = arith.addf %20, %22 : vector<16x32xf32>
    %24 = arith.truncf %23 : vector<16x32xf32> to vector<16x32xbf16>
    %c0_9 = arith.constant 0 : index
    %c0_10 = arith.constant 0 : index
    %25 = vector.load %arg4[%c0_9, %c0_10] : memref<16x32xbf16, #tpu.memory_space<vmem>>, vector<16x32xbf16>
    tpu.vector_store %arg4[%c0_9, %c0_10], %24 {strides = array<i32>} : memref<16x32xbf16, #tpu.memory_space<vmem>>, vector<16x32xbf16>,
    return
  }
  func.func @transform_0(%arg0: i32) -> (i32, i32) {
    %c0_i32 = arith.constant 0 : i32
    %c0_i32_0 = arith.constant 0 : i32
    return %arg0, %c0_i32 : i32, i32
  }
  func.func @transform_1(%arg0: i32) -> (i32, i32) {
    %c0_i32 = arith.constant 0 : i32
    %c0_i32_0 = arith.constant 0 : i32
    %c0_i32_1 = arith.constant 0 : i32
    return %c0_i32, %c0_i32_0 : i32, i32
  }
  func.func @transform_2(%arg0: i32) -> (i32, i32) {
    %c0_i32 = arith.constant 0 : i32
    %c0_i32_0 = arith.constant 0 : i32
    %c0_i32_1 = arith.constant 0 : i32
    return %c0_i32, %c0_i32_0 : i32, i32
  }
  func.func @transform_3(%arg0: i32) -> (i32, i32) {
    %c0_i32 = arith.constant 0 : i32
    %c0_i32_0 = arith.constant 0 : i32
    return %arg0, %c0_i32 : i32, i32
  }
}

</mosaic_0001>

<llo_original>
// kernel: tpu_custom_call.1
$region0: #{tpu_custom_call.1}
  #allocation0 [shape = 'u32[]', space=smem, size = 0x4, offset = 0x4, fixed_abs, tag = 'smem constant byte address 0x4 - core index']
  #allocation1 [shape = 'u32[144,128]{1,0:T(1,128)}', space=vmem, size = 0x12000, scoped, tag = 'internal scratch']
  %s0 = inlined_call_operand.hbm [shape: bf16[16,32], index: 0, kind: input, shape index: {}]
  %s1 = inlined_call_operand.vmem [shape: f32[1,32], index: 1, kind: input, shape index: {}]
  %s2 = inlined_call_operand.vmem [shape: f32[1,32], index: 2, kind: input, shape index: {}]
  %s3 = inlined_call_operand.hbm [shape: bf16[16,32], index: 3, kind: output, shape index: {}]
  %s4 = sld [smem:[#allocation0]]
  $region26: #{tpu_custom_call.1} parent=0
    _
  %s6 = ssub.s32 1, %s4
  %s7 = scalar_select 0, %s6, %s4
  $region1: #{tpu_custom_call.1} parent=0
    #allocation2 [shape = 'u8[4096]{0}', space=vmem, size = 0x1000, scoped, tag = 'input window, operand 0, single buffered']
    #allocation3 [shape = 's32[1]{0}', space=sflag, size = 0x4, scoped, tag = 'scoped memory for tpu_custom_call.1']
    #allocation4 [shape = 's32[1]{0}', space=sflag, size = 0x4, scoped, tag = 'scoped memory for tpu_custom_call.1']
    #allocation5 [shape = 'u8[4096]{0}', space=vmem, size = 0x1000, scoped, tag = 'output window, operand 0, single buffered']
    %8 = vsyncpa [#allocation3], 0
    %9 = vsyncpa [#allocation4], 0
    // Predicated region
    $region2: #{tpu_custom_call.1} parent=1 // pred_check
      _
    $region3: #{tpu_custom_call.1} parent=1 // pred_check_branch
      %11 = sbr.rel (0) target = $region5
    $region4: #{tpu_custom_call.1} parent=1 // pred_region
      %s13 = ssub.s32 128, 128
      %14 = vsyncadd [#allocation3], %s13
      %s15 = sshll.u32 [#allocation2], 4
      %s16 = int_to_ptr.vmem [resolvable:$true] %s15
      %21 = dma.hbm_to_vmem [thread:$0]  %s0, 128, %s16, [#allocation3], 64, 64, 4
    $region5: #{tpu_custom_call.1} parent=1 // pred_fallthru
      _
    // Predicated region
    $region6: #{tpu_custom_call.1} parent=1 // pred_check
      _
    $region7: #{tpu_custom_call.1} parent=1 // pred_check_branch
      %23 = sbr.rel (0) target = $region9
    $region8: #{tpu_custom_call.1} parent=1 // pred_region
      _
    $region9: #{tpu_custom_call.1} parent=1 // pred_fallthru
      _
    // Predicated region
    $region10: #{tpu_custom_call.1} parent=1 // pred_check
      _
    $region11: #{tpu_custom_call.1} parent=1 // pred_check_branch
      %25 = sbr.rel (0) target = $region13
    $region12: #{tpu_custom_call.1} parent=1 // pred_region
      _
    $region13: #{tpu_custom_call.1} parent=1 // pred_fallthru
      _
    // Predicated region
    $region14: #{tpu_custom_call.1} parent=1 // pred_check
      _
    $region15: #{tpu_custom_call.1} parent=1 // pred_check_branch
      %27 = sbr.rel (0) target = $region17
    $region16: #{tpu_custom_call.1} parent=1 // pred_region
      %28 = dma.done [#allocation3], 128
    $region17: #{tpu_custom_call.1} parent=1 // pred_fallthru
      _
    %v29 = vld [vmem:[#allocation2] sm:$0xf]
    %v30 = vld [vmem:[#allocation2 + $0x4] sm:$0xf]
    %v31 = vunpack.c.l.bf16 %v29
    %v32 = vunpack.c.l.bf16 %v30
    %vm33 = vcmask 261120
    %v34 = vsel %vm33, %v31, 0.0
    %35 = vadd.xlane.f32.xlu0 %v34
    %v36 = vpop.xlane.xlu0 %35
    %v37 = vsel %vm33, %v32, 0.0
    %38 = vadd.xlane.f32.xlu0 %v37
    %v39 = vpop.xlane.xlu0 %38
    %v40 = vrcp.pop 32.0
    %v41 = vmul.f32 %v36, %v40
    %v42 = vmul.f32 %v39, %v40
    %v43 = vsub.f32 %v31, %v41
    %v44 = vsub.f32 %v32, %v42
    %v45 = vmul.f32 %v43, %v43
    %v46 = vmul.f32 %v44, %v44
    %v47 = vsel %vm33, %v45, 0.0
    %48 = vadd.xlane.f32.xlu0 %v47
    %v49 = vpop.xlane.xlu0 %48
    %v50 = vsel %vm33, %v46, 0.0
    %51 = vadd.xlane.f32.xlu0 %v50
    %v52 = vpop.xlane.xlu0 %51
    %v53 = vmul.f32 %v49, %v40
    %v54 = vmul.f32 %v52, %v40
    %v55 = vadd.f32 %v53, 1e-05
    %v56 = vadd.f32 %v54, 1e-05
    %v57 = vrsqrt.pop %v55
    %v58 = vrsqrt.pop %v56
    %v59 = vmul.f32 %v43, %v57
    %v60 = vmul.f32 %v44, %v58
    %v61 = vld [vmem:[%s1] sm:$0x1]
    %v63 = vlaneseq
    %v64 = vshrl.u32 %v63, 7
    %v65 = vsub.s32 0, %v64
    %v66 = vrot.slane %v61, %v65
    %v68 = vmul.f32 %v59, %v66
    %v69 = vmul.f32 %v60, %v66
    %v70 = vld [vmem:[%s2] sm:$0x1]
    %v72 = vlaneseq
    %v73 = vshrl.u32 %v72, 7
    %v74 = vsub.s32 0, %v73
    %v75 = vrot.slane %v70, %v74
    %v77 = vadd.f32 %v68, %v75
    %v78 = vadd.f32 %v69, %v75
    %v79 = vpack.c.bf16 %v78, %v77
    %v81 = vunpack.c.l.b16 %v79
    %v82 = vunpack.c.h.b16 %v79
    %v83 = vpack.c.b16 %v81, %v81
    %v84 = vpack.c.b16 %v82, %v82
    %vm87 = vcmask 257024
    %88 = vst.msk [vmem:[#allocation5] sm:$0xf] %vm87, %v83
    %89 = vst.msk [vmem:[#allocation5 + $0x4] sm:$0xf] %vm87, %v84
    // Predicated region
    $region18: #{tpu_custom_call.1} parent=1 // pred_check
      _
    $region19: #{tpu_custom_call.1} parent=1 // pred_check_branch
      %91 = sbr.rel (0) target = $region21
    $region20: #{tpu_custom_call.1} parent=1 // pred_region
      %s93 = ssub.s32 128, 128
      %94 = vsyncadd [#allocation4], %s93
      %s95 = sshll.u32 [#allocation5], 4
      %s96 = int_to_ptr.vmem [resolvable:$true] %s95
      %101 = dma.vmem_to_hbm [thread:$0]  %s96, 128, %s3, [#allocation4], 64, 64, 4
    $region21: #{tpu_custom_call.1} parent=1 // pred_fallthru
      _
    // Predicated region
    $region22: #{tpu_custom_call.1} parent=1 // pred_check
      _
    $region23: #{tpu_custom_call.1} parent=1 // pred_check_branch
      %103 = sbr.rel (0) target = $region25
    $region24: #{tpu_custom_call.1} parent=1 // pred_region
      %104 = dma.done [#allocation4], 128
    $region25: #{tpu_custom_call.1} parent=1 // pred_fallthru
      _
    %105 = vsyncpa [#allocation3], 1
    %106 = vsyncpa [#allocation4], 1

</llo_original>
